<compile_context>
chip_gen: v7x
topology: tpu7x:2x2x1
jax: 0.10.0
libtpu: 0.0.40
codegen_flags: <defaults>
</compile_context>

<pallas_src>
import functools

import jax
import jax.numpy as jnp
from jax.experimental import pallas as pl
from jax.experimental.pallas import tpu as pltpu


# ----------------------------- Pallas kernels -------------------------------

def _linear_kernel(x_ref, w_ref, b_ref, o_ref):
    # x: (tm, K), w: (K, N) pre-transposed in the wrapper, b: (1, N).
    # bf16 MXU operands, fp32 accumulate.
    x = x_ref[...].astype(jnp.bfloat16)
    w = w_ref[...].astype(jnp.bfloat16)
    acc = jax.lax.dot_general(
        x, w, dimension_numbers=(((1,), (0,)), ((), ())),
        preferred_element_type=jnp.float32)
    o_ref[...] = (acc + b_ref[...]).astype(o_ref.dtype)


# TODO(synk): qkv_proj / o_proj are GPTQ-quantized linears in the source repo; they are
# modeled here as dense fp32 linears (same forward semantics after dequantization).
def pallas_linear(x2d, w_t, b):
    """x2d: (M, K), w_t: (K, N) (already transposed), b: (N,)."""
    M, K = x2d.shape
    N = w_t.shape[1]
    # M-tiled; weight/bias stay VMEM-resident across the grid; 'parallel' axis lets
    # the pipeline (and both v7x TensorCores) split the rows.
    tm = 256 if M >= 512 else (64 if M >= 128 else M)
    grid = (pl.cdiv(M, tm),)
    return pl.pallas_call(
        _linear_kernel,
        out_shape=jax.ShapeDtypeStruct((M, N), x2d.dtype),
        grid=grid,
        in_specs=[
            pl.BlockSpec((tm, K), lambda i: (i, 0)),
            pl.BlockSpec((K, N), lambda i: (0, 0)),
            pl.BlockSpec((1, N), lambda i: (0, 0)),
        ],
        out_specs=pl.BlockSpec((tm, N), lambda i: (i, 0)),
        compiler_params=pltpu.CompilerParams(dimension_semantics=("parallel",)),
    )(x2d, w_t, b.reshape(1, N))


def _attn_kernel(q_ref, k_ref, v_ref, rc_ref, mask_ref, o_ref, *, scale):
    # One batch element per grid step; all heads of that batch are processed here.
    #   q/k/v: (1, nh, S, hd)
    #   rc   : (S, H*hd)  rc[n, mh*hd+c]  = Rh[mh, n//W, c] + Rw[mh, n%W, c]   (grid-invariant)
    #   mask : (S, H*hd)  mask[m, mh*hd+c] = (m // W == mh)                    (grid-invariant)
    #   o    : (1, S, nh*hd)  -- head-major lane layout, i.e. (B, S, C)
    nh = q_ref.shape[1]
    hd = q_ref.shape[3]
    reps = mask_ref.shape[1] // hd

    rc = rc_ref[...]
    mask = mask_ref[...]

    outs = []
    for h in range(nh):          # nh is a small compile-time constant -> static unroll
        qh = q_ref[0, h]         # (S, hd) f32
        kh = k_ref[0, h]
        vh = v_ref[0, h]

        # Fused "scores + decomposed rel-pos bias" in a SINGLE MXU pass:
        #   lhs = [scale*q | q replicated per head-row-height, masked]  (S, hd + H*hd)
        #   rhs = [k       | combined Rh/Rw table]                      (S, hd + H*hd)
        #   lhs @ rhs^T == scale * q @ k^T + rel_h[m, n//W] + rel_w[m, n%W]
        q_exp = jnp.concatenate([qh] * reps, axis=1) * mask            # (S, H*hd)
        lhs = jnp.concatenate([qh * scale, q_exp], axis=1).astype(jnp.bfloat16)
        rhs = jnp.concatenate([kh, rc], axis=1).astype(jnp.bfloat16)
        s = jax.lax.dot_general(
            lhs, rhs, dimension_numbers=(((1,), (1,)), ((), ())),
            preferred_element_type=jnp.float32)                        # (S, S)

        # softmax kept in fp32 (v5e has no bf16 VPU/EUP)
        m = jnp.max(s, axis=-1, keepdims=True)
        p = jnp.exp(s - m)
        l = jnp.sum(p, axis=-1, keepdims=True)
        acc = jax.lax.dot_general(
            p.astype(jnp.bfloat16), vh.astype(jnp.bfloat16),
            dimension_numbers=(((1,), (0,)), ((), ())),
            preferred_element_type=jnp.float32)                        # (S, hd)
        outs.append(acc * pl.reciprocal(l, approx=True))

    # single lane-dense (S, C) store; layout already matches (B, S, num_heads*hd)
    o_ref[0] = jnp.concatenate(outs, axis=1).astype(o_ref.dtype)


# TODO(synk): for large S (>~1.5-2K) this monolithic SxS score block must switch to
# flash-style KV tiling (online softmax + acc/m/l scratch) to fit v7x's 64 MiB VMEM.
def pallas_attention(q, k, v, rcombT, mask, *, scale):
    B, nh, S, hd = q.shape
    C = nh * hd
    Hhd = rcombT.shape[1]
    kernel = functools.partial(_attn_kernel, scale=scale)
    return pl.pallas_call(
        kernel,
        out_shape=jax.ShapeDtypeStruct((B, S, C), q.dtype),
        grid=(B,),
        in_specs=[
            pl.BlockSpec((1, nh, S, hd), lambda b: (b, 0, 0, 0)),
            pl.BlockSpec((1, nh, S, hd), lambda b: (b, 0, 0, 0)),
            pl.BlockSpec((1, nh, S, hd), lambda b: (b, 0, 0, 0)),
            pl.BlockSpec((S, Hhd), lambda b: (0, 0)),   # grid-invariant, VMEM-resident
            pl.BlockSpec((S, Hhd), lambda b: (0, 0)),   # grid-invariant, VMEM-resident
        ],
        out_specs=pl.BlockSpec((1, S, C), lambda b: (b, 0, 0)),
        compiler_params=pltpu.CompilerParams(dimension_semantics=("parallel",)),
    )(q, k, v, rcombT, mask)


# ----------------------------- JAX glue --------------------------------------

def get_rel_pos(q_size, k_size, rel_pos):
    # TODO(synk): the interpolation branch of the reference get_rel_pos is skipped
    # (rel_pos always has exactly 2*k_size-1 rows here).
    q_coords = jnp.arange(q_size)[:, None]
    k_coords = jnp.arange(k_size)[None, :]
    rel = q_coords - k_coords + (k_size - 1)
    return rel_pos[rel]  # (q_size, k_size, head_dim)


def quant_attention_forward(x, params, *, num_heads, scale):
    B, H, W, C = x.shape
    assert H == W, "reference broadcast in add_decomposed_rel_pos requires H == W"
    hd = C // num_heads
    S = H * W

    # pre-transpose weights once to (K, N) so the kernels contract (M,K)@(K,N)
    w_qkv_t = jnp.transpose(params["w_qkv"])   # (C, 3C)
    w_o_t = jnp.transpose(params["w_o"])       # (C, C)

    # qkv projection (tiled Pallas matmul)
    qkv = pallas_linear(x.reshape(B * S, C), w_qkv_t, params["b_qkv"])
    qkv = qkv.reshape(B, S, 3, num_heads, hd)
    qkv = jnp.transpose(qkv, (2, 0, 3, 1, 4))            # (3, B, nh, S, hd)
    q, k, v = qkv[0], qkv[1], qkv[2]                     # (B, nh, S, hd)

    # Grid-invariant rel-pos operands.  NOTE: this faithfully reproduces the torch.matmul
    # broadcast of the reference -- BOTH rel_h and rel_w index their table by the query
    # *height* coordinate (what the 4D x 3D matmul broadcast does when H == W).
    Rh = get_rel_pos(H, H, params["rel_pos_h"])          # (H, H, hd)
    Rw = get_rel_pos(W, W, params["rel_pos_w"])          # (W, W, hd)
    n_idx = jnp.arange(S)
    rcomb = Rh[:, n_idx // W, :] + Rw[:, n_idx % W, :]   # (H, S, hd)
    rcombT = jnp.transpose(rcomb, (1, 0, 2)).reshape(S, H * hd)   # (S, H*hd)
    m_idx = jnp.arange(S)[:, None]
    j_idx = jnp.arange(H * hd)[None, :]
    mask = ((m_idx // W) == (j_idx // hd)).astype(x.dtype)        # (S, H*hd)

    # Fused attention with decomposed rel-pos bias (Pallas kernel), output is (B, S, C)
    attn = pallas_attention(q, k, v, rcombT, mask, scale=scale)

    # output projection (tiled Pallas matmul)
    out = pallas_linear(attn.reshape(B * S, C), w_o_t, params["b_o"])
    return out.reshape(B, H, W, C)


def reference_forward(x, params, *, num_heads, scale):
    """Pure-JAX fp32 reference with identical semantics, for correctness checking."""
    B, H, W, C = x.shape
    hd = C // num_heads
    S = H * W
    qkv = x.reshape(B * S, C) @ params["w_qkv"].T + params["b_qkv"]
    qkv = qkv.reshape(B, S, 3, num_heads, hd)
    qkv = jnp.transpose(qkv, (2, 0, 3, 1, 4))
    q = qkv[0].reshape(B * num_heads, S, hd)
    k = qkv[1].reshape(B * num_heads, S, hd)
    v = qkv[2].reshape(B * num_heads, S, hd)
    Rh = get_rel_pos(H, H, params["rel_pos_h"])
    Rw = get_rel_pos(W, W, params["rel_pos_w"])
    q4 = q.reshape(B * num_heads, H, W, hd)
    rel_h = jnp.einsum("bhwc,hkc->bhwk", q4, Rh)
    rel_w = jnp.einsum("bhwc,hkc->bhwk", q4, Rw)
    bias = (rel_h[..., :, None] + rel_w[..., None, :]).reshape(B * num_heads, S, S)
    scores = jnp.einsum("bmd,bnd->bmn", q, k) * scale + bias
    p = jax.nn.softmax(scores, axis=-1)
    o = jnp.einsum("bmn,bnd->bmd", p, v)
    o = jnp.transpose(o.reshape(B, num_heads, S, hd), (0, 2, 1, 3)).reshape(B * S, C)
    out = o @ params["w_o"].T + params["b_o"]
    return out.reshape(B, H, W, C)


# ----------------------------- main -------------------------------------------

if __name__ == "__main__":
    B, H, W = 2, 8, 8
    num_heads = 2
    head_dim = 16
    C = num_heads * head_dim
    scale = head_dim ** -0.5

    key = jax.random.PRNGKey(0)
    kx, k1, k2, k3, k4, k5, k6 = jax.random.split(key, 7)
    x = jax.random.normal(kx, (B, H, W, C), dtype=jnp.float32)
    params = {
        "w_qkv": jax.random.normal(k1, (3 * C, C), dtype=jnp.float32) * 0.05,
        "b_qkv": jax.random.normal(k2, (3 * C,), dtype=jnp.float32) * 0.05,
        "w_o": jax.random.normal(k3, (C, C), dtype=jnp.float32) * 0.05,
        "b_o": jax.random.normal(k4, (C,), dtype=jnp.float32) * 0.05,
        "rel_pos_h": jax.random.normal(k5, (2 * H - 1, head_dim), dtype=jnp.float32) * 0.05,
        "rel_pos_w": jax.random.normal(k6, (2 * W - 1, head_dim), dtype=jnp.float32) * 0.05,
    }

    out = quant_attention_forward(x, params, num_heads=num_heads, scale=scale)
    out = jax.block_until_ready(out)

    ref = reference_forward(x, params, num_heads=num_heads, scale=scale)
    assert out.shape == (B, H, W, C)
    # bf16 MXU operands (fp32 accumulate) -> compare against the fp32 reference with a
    # tolerance matching bf16 matmul precision.
    assert jnp.allclose(out, ref, atol=2e-2, rtol=2e-2), \
        f"max_err={float(jnp.max(jnp.abs(out - ref)))}"
    print("KERNEL_OK")
</pallas_src>

<mosaic_0001>
module attributes {stable_mosaic.version = 11 : i64} {
  func.func @_linear_kernel(%arg0: i32, %arg1: memref<64x32xf32, #tpu.memory_space<vmem>>, %arg2: memref<32x96xf32, #tpu.memory_space<vmem>>, %arg3: memref<1x96xf32, #tpu.memory_space<vmem>>, %arg4: memref<64x96xf32, #tpu.memory_space<vmem>>) attributes {dimension_semantics = [#tpu.dimension_semantics<parallel>], iteration_bounds = array<i64: 2>, scalar_prefetch = 0 : i64, scratch_operands = 0 : i64, tpu.core_type = #tpu.core_type<tc>, window_params = [{transform_indices = @transform_0, window_bounds = array<i64: 64, 32>}, {pipeline_mode = #tpu.pipeline_mode<synchronous>, transform_indices = @transform_1, window_bounds = array<i64: 32, 96>}, {pipeline_mode = #tpu.pipeline_mode<synchronous>, transform_indices = @transform_2, window_bounds = array<i64: 1, 96>}, {transform_indices = @transform_3, window_bounds = array<i64: 64, 96>}]} {
    %c0 = arith.constant 0 : index
    %c0_0 = arith.constant 0 : index
    %0 = vector.load %arg1[%c0, %c0_0] : memref<64x32xf32, #tpu.memory_space<vmem>>, vector<64x32xf32>
    %1 = arith.truncf %0 : vector<64x32xf32> to vector<64x32xbf16>
    %c0_1 = arith.constant 0 : index
    %c0_2 = arith.constant 0 : index
    %2 = vector.load %arg2[%c0_1, %c0_2] : memref<32x96xf32, #tpu.memory_space<vmem>>, vector<32x96xf32>
    %3 = arith.truncf %2 : vector<32x96xf32> to vector<32x96xbf16>
    %cst = arith.constant dense<0.000000e+00> : vector<64x96xf32>
    %4 = tpu.matmul %1, %3, %cst {dimension_numbers = #tpu.dot_dimension_numbers<[1], [0], [0], [1], [0, 0, 1, 1], [], []>} : vector<64x32xbf16>, vector<32x96xbf16>, vector<64x96xf32> -> vector<64x96xf32>
    %c0_3 = arith.constant 0 : index
    %c0_4 = arith.constant 0 : index
    %5 = vector.load %arg3[%c0_3, %c0_4] : memref<1x96xf32, #tpu.memory_space<vmem>>, vector<1x96xf32>
    %6 = vector.broadcast %5 : vector<1x96xf32> to vector<64x96xf32>
    %7 = arith.addf %4, %6 : vector<64x96xf32>
    %c0_5 = arith.constant 0 : index
    %c0_6 = arith.constant 0 : index
    %8 = vector.load %arg4[%c0_5, %c0_6] : memref<64x96xf32, #tpu.memory_space<vmem>>, vector<64x96xf32>
    tpu.vector_store %arg4[%c0_5, %c0_6], %7 {strides = array<i32>} : memref<64x96xf32, #tpu.memory_space<vmem>>, vector<64x96xf32>,
    return
  }
  func.func @transform_0(%arg0: i32) -> (i32, i32) {
    %c0_i32 = arith.constant 0 : i32
    %c0_i32_0 = arith.constant 0 : i32
    return %arg0, %c0_i32 : i32, i32
  }
  func.func @transform_1(%arg0: i32) -> (i32, i32) {
    %c0_i32 = arith.constant 0 : i32
    %c0_i32_0 = arith.constant 0 : i32
    %c0_i32_1 = arith.constant 0 : i32
    return %c0_i32, %c0_i32_0 : i32, i32
  }
  func.func @transform_2(%arg0: i32) -> (i32, i32) {
    %c0_i32 = arith.constant 0 : i32
    %c0_i32_0 = arith.constant 0 : i32
    %c0_i32_1 = arith.constant 0 : i32
    return %c0_i32, %c0_i32_0 : i32, i32
  }
  func.func @transform_3(%arg0: i32) -> (i32, i32) {
    %c0_i32 = arith.constant 0 : i32
    %c0_i32_0 = arith.constant 0 : i32
    return %arg0, %c0_i32 : i32, i32
  }
}

</mosaic_0001>

<llo_original>
// kernel: tpu_custom_call.1
$region0: #{tpu_custom_call.1}
  #allocation0 [shape = 'u32[]', space=smem, size = 0x4, offset = 0x4, fixed_abs, tag = 'smem constant byte address 0x4 - core index']
  #allocation1 [shape = 'u32[144,128]{1,0:T(1,128)}', space=vmem, size = 0x12000, scoped, tag = 'internal scratch']
  %s0 = inlined_call_operand.vmem [shape: f32[128,32], index: 0, kind: input, shape index: {}]
  %s1 = inlined_call_operand.vmem [shape: f32[32,96], index: 1, kind: input, shape index: {}]
  %s2 = inlined_call_operand.vmem [shape: f32[1,96], index: 2, kind: input, shape index: {}]
  %s3 = inlined_call_operand.vmem [shape: f32[128,96], index: 3, kind: output, shape index: {}]
  %s4 = sld [smem:[#allocation0]]
  $region45: #{tpu_custom_call.1} parent=0
    _
  %s6 = ssub.s32 1, %s4
  %s7 = scalar_select 0, %s6, %s4
  loop: start=0, step=1, limit=4
  $region2: #{tpu_custom_call.1} parent=0 // loop_pre_header
    _
  $region3: #{tpu_custom_call.1} parent=0 // loop_header
    %s9 = sphi 0, %s13
    %p10 = scmp.ge.s32.totalorder %s9, 4
    %s19 = sphi 0, %s21
    %s22 = sphi 0, %s19
    %s23 = sphi 0, %s22
    %s39 = sphi 0, %s23
    %s43 = sphi 0, %s43
    %s45 = sphi 0, %s43
    %s46 = sphi 0, %s45
    %s60 = sphi 0, %s46
    %s64 = sphi 0, %s64
    %s66 = sphi 0, %s64
    %s67 = sphi 0, %s66
    %s81 = sphi 0, %s67
    %s87 = sphi 0, %s89
    %s90 = sphi 0, %s87
    %s91 = sphi 0, %s90
    %s107 = sphi 0, %s91
  $region4: #{tpu_custom_call.1} parent=0 // loop_header_branch
    %12 = sbr.rel (%p10) target = $region8
  $region5: #{tpu_custom_call.1} parent=0 // loop_body
    %s14 = ssub.s32 %s9, 1
    %s15 = ssub.s32 %s9, 2
    %s16 = sadd.s32 %s9, 1
    %s17 = ssub.s32 %s9, %s16
    %p18 = scmp.eq.s32.totalorder %s17, 0
    %s20 = sadd.s32 %s19, 1
    %s21 = scalar_select %p18, %s19, %s20
    %p24 = pneg %p18
    %p25 = scmp.eq.s32.totalorder %s9, 1
    %p26 = por %p24, %p25
    %p27 = scmp.ne.s32.totalorder %s19, %s22
    %p28 = scmp.eq.s32.totalorder %s9, 0
    %p29 = por %p27, %p28
    %p30 = scmp.ne.s32.totalorder %s19, %s22
    %p31 = scmp.eq.s32.totalorder %s14, 1
    %p32 = por %p30, %p31
    %p33 = scmp.ne.s32.totalorder %s22, %s23
    %p34 = scmp.eq.s32.totalorder %s14, 0
    %p35 = por %p33, %p34
    %p36 = scmp.ne.s32.totalorder %s22, %s23
    %p37 = scmp.eq.s32.totalorder %s15, 1
    %p38 = por %p36, %p37
    %p40 = scmp.ne.s32.totalorder %s23, %s39
    %p41 = scmp.eq.s32.totalorder %s15, 0
    %p42 = por %p40, %p41
    %s44 = sadd.s32 %s43, 1
    %p47 = scmp.eq.s32.totalorder %s9, 1
    %p48 = scmp.ne.s32.totalorder %s43, %s45
    %p49 = scmp.eq.s32.totalorder %s9, 0
    %p50 = por %p48, %p49
    %p51 = scmp.ne.s32.totalorder %s43, %s45
    %p52 = scmp.eq.s32.totalorder %s14, 1
    %p53 = por %p51, %p52
    %p54 = scmp.ne.s32.totalorder %s45, %s46
    %p55 = scmp.eq.s32.totalorder %s14, 0
    %p56 = por %p54, %p55
    %p57 = scmp.ne.s32.totalorder %s45, %s46
    %p58 = scmp.eq.s32.totalorder %s15, 1
    %p59 = por %p57, %p58
    %p61 = scmp.ne.s32.totalorder %s46, %s60
    %p62 = scmp.eq.s32.totalorder %s15, 0
    %p63 = por %p61, %p62
    %s65 = sadd.s32 %s64, 1
    %p68 = scmp.eq.s32.totalorder %s9, 1
    %p69 = scmp.ne.s32.totalorder %s64, %s66
    %p70 = scmp.eq.s32.totalorder %s9, 0
    %p71 = por %p69, %p70
    %p72 = scmp.ne.s32.totalorder %s64, %s66
    %p73 = scmp.eq.s32.totalorder %s14, 1
    %p74 = por %p72, %p73
    %p75 = scmp.ne.s32.totalorder %s66, %s67
    %p76 = scmp.eq.s32.totalorder %s14, 0
    %p77 = por %p75, %p76
    %p78 = scmp.ne.s32.totalorder %s66, %s67
    %p79 = scmp.eq.s32.totalorder %s15, 1
    %p80 = por %p78, %p79
    %p82 = scmp.ne.s32.totalorder %s67, %s81
    %p83 = scmp.eq.s32.totalorder %s15, 0
    %p84 = por %p82, %p83
    %s85 = ssub.s32 %s9, %s16
    %p86 = scmp.eq.s32.totalorder %s85, 0
    %s88 = sadd.s32 %s87, 1
    %s89 = scalar_select %p86, %s87, %s88
    %p92 = pneg %p86
    %p93 = scmp.eq.s32.totalorder %s9, 1
    %p94 = por %p92, %p93
    %p95 = scmp.ne.s32.totalorder %s87, %s90
    %p96 = scmp.eq.s32.totalorder %s9, 0
    %p97 = por %p95, %p96
    %p98 = scmp.ne.s32.totalorder %s87, %s90
    %p99 = scmp.eq.s32.totalorder %s14, 1
    %p100 = por %p98, %p99
    %p101 = scmp.ne.s32.totalorder %s90, %s91
    %p102 = scmp.eq.s32.totalorder %s14, 0
    %p103 = por %p101, %p102
    %p104 = scmp.ne.s32.totalorder %s90, %s91
    %p105 = scmp.eq.s32.totalorder %s15, 1
    %p106 = por %p104, %p105
    %p108 = scmp.ne.s32.totalorder %s91, %s107
    %p109 = scmp.eq.s32.totalorder %s15, 0
    %p110 = por %p108, %p109
    %p111 = scmp.le.s32.totalorder 1, %s9
    %p112 = scmp.lt.s32.totalorder %s9, 3
    %p113 = pnand %p111, %p112
    %p114 = pneg %p113
    // Predicated region
    $region9: #{tpu_custom_call.1} parent=5 // pred_check
      _
    $region10: #{tpu_custom_call.1} parent=5 // pred_check_branch
      %116 = sbr.rel (%p113) target = $region12
    $region11: #{tpu_custom_call.1} parent=5 // pred_region
      %s117 = ssub.s32 %s9, 1
      // Predicated region
      $region13: #{tpu_custom_call.1} parent=11 // pred_check
        %p118 = pneg %p56
      $region14: #{tpu_custom_call.1} parent=11 // pred_check_branch
        %120 = sbr.rel (%p118) target = $region16
      $region15: #{tpu_custom_call.1} parent=11 // pred_region
        _
      $region16: #{tpu_custom_call.1} parent=11 // pred_fallthru
        _
      // Predicated region
      $region17: #{tpu_custom_call.1} parent=11 // pred_check
        %p121 = pneg %p77
      $region18: #{tpu_custom_call.1} parent=11 // pred_check_branch
        %123 = sbr.rel (%p121) target = $region20
      $region19: #{tpu_custom_call.1} parent=11 // pred_region
        _
      $region20: #{tpu_custom_call.1} parent=11 // pred_fallthru
        _
    $region12: #{tpu_custom_call.1} parent=5 // pred_fallthru
      _
    %p124 = scmp.lt.s32.totalorder %s9, 2
    // Predicated region
    $region21: #{tpu_custom_call.1} parent=5 // pred_check
      %p125 = pneg %p124
    $region22: #{tpu_custom_call.1} parent=5 // pred_check_branch
      %127 = sbr.rel (%p125) target = $region24
    $region23: #{tpu_custom_call.1} parent=5 // pred_region
      // Predicated region
      $region25: #{tpu_custom_call.1} parent=23 // pred_check
        %p128 = pneg %p29
      $region26: #{tpu_custom_call.1} parent=23 // pred_check_branch
        %130 = sbr.rel (%p128) target = $region28
      $region27: #{tpu_custom_call.1} parent=23 // pred_region
        %s131 = smul.u32 8, %s9
        %p132 = scmp.lt.s32.totalorder %s131, 15
        %s133 = scalar_select %p132, %s131, 15
        %s134 = smul.addr %s133, 8
        %s135 = scalar_lea.vmem %s0, %s134
        %s136 = smul.u32 8, %s9
      $region28: #{tpu_custom_call.1} parent=23 // pred_fallthru
        _
    $region24: #{tpu_custom_call.1} parent=5 // pred_fallthru
      _
    %p137 = scmp.le.s32.totalorder 1, %s9
    %p138 = scmp.lt.s32.totalorder %s9, 3
    %p139 = pnand %p137, %p138
    %p140 = pneg %p139
    // Predicated region
    $region29: #{tpu_custom_call.1} parent=5 // pred_check
      _
    $region30: #{tpu_custom_call.1} parent=5 // pred_check_branch
      %142 = sbr.rel (%p139) target = $region32
    $region31: #{tpu_custom_call.1} parent=5 // pred_region
      %s143 = ssub.s32 %s9, 1
      %s144 = smul.u32 8, %s14
      %p145 = scmp.lt.s32.totalorder %s144, 15
      %s146 = scalar_select %p145, %s144, 15
      %s147 = smul.addr %s146, 8
      %s148 = scalar_lea.vmem %s0, %s147
      %p149 = pneg %p35
      %p150 = pneg %p32
      %p151 = pneg %p56
      %p152 = pneg %p53
      %p153 = pneg %p77
      %p154 = pneg %p74
      %p155 = pneg %p103
      %p156 = pneg %p100
      %s157 = smul.u32 8, %s14
      %p158 = scmp.lt.s32.totalorder %s157, 15
      %s159 = scalar_select %p158, %s157, 15
      %s160 = smul.addr %s159, 8
      %s161 = scalar_lea.vmem %s3, %s160
      %s162 = smul.u32 8, %s14
      %p163 = scmp.lt.s32.totalorder %s162, 15
      %s164 = scalar_select %p163, %s162, 15
      %s165 = smul.addr %s164, 8
      %s166 = scalar_lea.vmem %s0, %s165
      %s167 = smul.u32 8, %s14
      %s168 = smul.u32 8, %s14
      %p169 = scmp.lt.s32.totalorder %s168, 15
      %s170 = scalar_select %p169, %s168, 15
      %s171 = smul.addr %s170, 8
      %s172 = scalar_lea.vmem %s3, %s171
      %s173 = smul.u32 8, %s14
      %v175 = vld [vmem:[%s166] sm:$0xff]
      %v176 = vld [vmem:[%s166 + $0x8] sm:$0xff]
      %v177 = vld [vmem:[%s166 + $0x10] sm:$0xff]
      %v178 = vld [vmem:[%s166 + $0x18] sm:$0xff]
      %v179 = vld [vmem:[%s166 + $0x20] sm:$0xff]
      %v180 = vld [vmem:[%s166 + $0x28] sm:$0xff]
      %v181 = vld [vmem:[%s166 + $0x30] sm:$0xff]
      %v182 = vld [vmem:[%s166 + $0x38] sm:$0xff]
      %v183 = vpack.c.bf16 %v176, %v175
      %v184 = vpack.c.bf16 %v178, %v177
      %v185 = vpack.c.bf16 %v180, %v179
      %v186 = vpack.c.bf16 %v182, %v181
      %v187 = vld [vmem:[%s1] sm:$0xff]
      %v188 = vld [vmem:[%s1 + $0x8] sm:$0xff]
      %v189 = vld [vmem:[%s1 + $0x10] sm:$0xff]
      %v190 = vld [vmem:[%s1 + $0x18] sm:$0xff]
      %v191 = vpack.c.bf16 %v188, %v187
      %v192 = vpack.c.bf16 %v190, %v189
      %v193 = vld [vmem:[%s2] sm:$0x1]
      %v195 = vlaneseq
      %v196 = vshrl.u32 %v195, 7
      %v197 = vsub.s32 0, %v196
      %v198 = vrot.slane %v193, %v197
      %vm200 = vcmask 261120
      %v202 = vsel %vm200, %v183, 0
      %v205 = vsel %vm200, %v184, 0
      %v208 = vsel %vm200, %v185, 0
      %v211 = vsel %vm200, %v186, 0
      %213 = vmatprep.subr.bf16.mxu0 0
      %214 = vmatpush1.bf16.msra.mxu0 %v191
      %215 = vmatprep.subr.bf16.mxu0 0
      %216 = vmatpush1.bf16.msra.mxu0 %v192
      %217 = vmatprep.subr.bf16.mxu0 0
      %218 = vmatpush1.bf16.msra.mxu0 0
      %219 = vmatprep.subr.bf16.mxu0 0
      %220 = vmatpush1.bf16.msra.mxu0 0
      %221 = vmatprep.subr.bf16.mxu0 0
      %222 = vmatpush1.bf16.msra.mxu0 0
      %223 = vmatprep.subr.bf16.mxu0 0
      %224 = vmatpush1.bf16.msra.mxu0 0
      %225 = vmatprep.subr.bf16.mxu0 0
      %226 = vmatpush1.bf16.msra.mxu0 0
      %227 = vmatprep.subr.bf16.mxu0 0
      %228 = vmatpush1.bf16.msra.mxu0 0
      %229 = vmatprep.subr.bf16.mxu0 0
      %230 = vmatpush1.bf16.msra.mxu0 0
      %231 = vmatprep.subr.bf16.mxu0 0
      %232 = vmatpush1.bf16.msra.mxu0 0
      %233 = vmatprep.subr.bf16.mxu0 0
      %234 = vmatpush1.bf16.msra.mxu0 0
      %235 = vmatprep.subr.bf16.mxu0 0
      %236 = vmatpush1.bf16.msra.mxu0 0
      %237 = vmatprep.subr.bf16.mxu0 0
      %238 = vmatpush1.bf16.msra.mxu0 0
      %239 = vmatprep.subr.bf16.mxu0 0
      %240 = vmatpush1.bf16.msra.mxu0 0
      %241 = vmatprep.subr.bf16.mxu0 0
      %242 = vmatpush1.bf16.msra.mxu0 0
      %243 = vmatprep.subr.bf16.mxu0 0
      %244 = vmatpush1.bf16.msra.mxu0 0
      %245 = vmatprep.mubr.bf16.mxu0 0
      %246 = vmatmul.mubr.bf16.gmra.mrb[0].mxu0 %v202
      %v247 = vpop.f32.mrb[0].mxu0
      %v248 = vadd.f32 %v198, %v247
      %v249 = vpop.f32.mrb[0].mxu0
      %v250 = vpop.f32.mrb[0].mxu0
      %v251 = vadd.f32 %v198, %v250
      %v252 = vpop.f32.mrb[0].mxu0
      %253 = vmatprep.mubr.bf16.mxu0 0
      %254 = vmatmul.mubr.bf16.gmra.mrb[0].mxu0 %v205
      %v255 = vpop.f32.mrb[0].mxu0
      %v256 = vadd.f32 %v198, %v255
      %v257 = vpop.f32.mrb[0].mxu0
      %v258 = vpop.f32.mrb[0].mxu0
      %v259 = vadd.f32 %v198, %v258
      %v260 = vpop.f32.mrb[0].mxu0
      %261 = vmatprep.mubr.bf16.mxu0 0
      %262 = vmatmul.mubr.bf16.gmra.mrb[0].mxu0 %v208
      %v263 = vpop.f32.mrb[0].mxu0
      %v264 = vadd.f32 %v198, %v263
      %v265 = vpop.f32.mrb[0].mxu0
      %v266 = vpop.f32.mrb[0].mxu0
      %v267 = vadd.f32 %v198, %v266
      %v268 = vpop.f32.mrb[0].mxu0
      %269 = vmatprep.mubr.bf16.mxu0 0
      %270 = vmatmul.mubr.bf16.gmra.mrb[0].mxu0 %v211
      %v271 = vpop.f32.mrb[0].mxu0
      %v272 = vadd.f32 %v198, %v271
      %v273 = vpop.f32.mrb[0].mxu0
      %v274 = vpop.f32.mrb[0].mxu0
      %v275 = vadd.f32 %v198, %v274
      %v276 = vpop.f32.mrb[0].mxu0
      %277 = vdwg.mxu0
      %vm278 = vcmask 785408
      %279 = vst.msk [vmem:[%s172] sm:$0xff] %vm278, %v248
      %280 = vst.msk [vmem:[%s172 + $0x8] sm:$0xff] %vm278, %v251
      %281 = vst.msk [vmem:[%s172 + $0x10] sm:$0xff] %vm278, %v256
      %282 = vst.msk [vmem:[%s172 + $0x18] sm:$0xff] %vm278, %v259
      %283 = vst.msk [vmem:[%s172 + $0x20] sm:$0xff] %vm278, %v264
      %284 = vst.msk [vmem:[%s172 + $0x28] sm:$0xff] %vm278, %v267
      %285 = vst.msk [vmem:[%s172 + $0x30] sm:$0xff] %vm278, %v272
      %286 = vst.msk [vmem:[%s172 + $0x38] sm:$0xff] %vm278, %v275
      %s287 = smul.u32 8, %s14
      %p288 = scmp.lt.s32.totalorder %s287, 15
      %s289 = scalar_select %p288, %s287, 15
      %s290 = smul.addr %s289, 8
      %s291 = scalar_lea.vmem %s3, %s290
      // Predicated region
      $region33: #{tpu_custom_call.1} parent=31 // pred_check
        %p292 = pneg %p100
      $region34: #{tpu_custom_call.1} parent=31 // pred_check_branch
        %294 = sbr.rel (%p292) target = $region36
      $region35: #{tpu_custom_call.1} parent=31 // pred_region
        %s295 = smul.u32 8, %s14
      $region36: #{tpu_custom_call.1} parent=31 // pred_fallthru
        _
    $region32: #{tpu_custom_call.1} parent=5 // pred_fallthru
      _
    %p296 = scmp.le.s32.totalorder 2, %s9
    // Predicated region
    $region37: #{tpu_custom_call.1} parent=5 // pred_check
      %p297 = pneg %p296
    $region38: #{tpu_custom_call.1} parent=5 // pred_check_branch
      %299 = sbr.rel (%p297) target = $region40
    $region39: #{tpu_custom_call.1} parent=5 // pred_region
      %s300 = ssub.s32 %s9, 2
      // Predicated region
      $region41: #{tpu_custom_call.1} parent=39 // pred_check
        %p301 = pneg %p106
      $region42: #{tpu_custom_call.1} parent=39 // pred_check_branch
        %303 = sbr.rel (%p301) target = $region44
      $region43: #{tpu_custom_call.1} parent=39 // pred_region
        %s304 = smul.u32 8, %s15
        %p305 = scmp.lt.s32.totalorder %s304, 15
        %s306 = scalar_select %p305, %s304, 15
        %s307 = smul.addr %s306, 8
        %s308 = scalar_lea.vmem %s3, %s307
      $region44: #{tpu_custom_call.1} parent=39 // pred_fallthru
        _
    $region40: #{tpu_custom_call.1} parent=5 // pred_fallthru
      _
  $region6: #{tpu_custom_call.1} parent=0 // loop_footer
    %s13 = sadd.s32 1, %s9
  $region7: #{tpu_custom_call.1} parent=0 // loop_footer_branch
    %8 = sbr.rel target = $region3
  $region8: #{tpu_custom_call.1} parent=0 // loop_exit
    _

</llo_original>
